<compile_context>
chip_gen: v7x
topology: tpu7x:2x2x1
jax: 0.10.0
libtpu: 0.0.40
codegen_flags: <defaults>
</compile_context>

<pallas_src>
import jax
import jax.numpy as jnp
from jax.experimental import pallas as pl
from jax.experimental.pallas import tpu as pltpu


def _round_up(x, m):
    return ((x + m - 1) // m) * m


def _vmem_budget_bytes():
    """Per-generation VMEM sizing: scoped limit requested from Mosaic and the
    slice of it the batch tile (+ compute temporaries) may use."""
    cap = 64 * 1024 * 1024                       # conservative fallback (v7x per-TC)
    try:
        info = pltpu.get_tpu_info()
        cap = int(getattr(info, "vmem_capacity_bytes", cap) or cap)
    except Exception:
        pass
    vmem_limit = min(cap * 3 // 4, cap - (8 << 20))   # headroom for Mosaic scratch
    vmem_limit = max(vmem_limit, 16 << 20)
    tile_budget = max(vmem_limit - (4 << 20), 8 << 20)
    return int(vmem_limit), int(tile_budget)


def _choose_tb(B, S, H, Sp, Hp, tile_budget):
    """Batch tile: sized against the real per-step VMEM cost (double-buffered
    enc/ht/ctx/aw blocks + ~3x the enc tile of f32 temporaries + resident
    weights), multiple of 8 (or == B), and split so the grid has >=2 steps
    whenever the split tiles stay large."""
    per_row = 4 * (S * H * (2 + 3) + 2 * H + 2 * Hp + 2 * Sp)
    resident = 4 * (2 * H * H + 2 * H)            # single-buffered w1t/w2t/b/v
    avail = max(tile_budget - resident, per_row)
    tb = max(8, (avail // per_row) // 8 * 8)
    # TODO(synk): when even TB=8 overflows the budget (very long S*H), chunk S
    # inside the kernel with an online (flash-style) softmax instead of spilling.

    # Prefer >=2 grid steps (v7x megacore sharding, DMA/compute overlap on all
    # generations) as long as each half keeps >=8 rows and a >=1 MiB enc tile.
    min_rows_for_split = max(8, (1 << 20) // max(4 * S * H, 1))
    if B >= 2 * min_rows_for_split:
        tb = min(tb, _round_up(pl.cdiv(B, 2), 8))

    if tb >= B:
        return int(B)                             # whole batch in one exact block
    return int(tb)


def _attention_kernel(ht_ref, enc_ref, w1t_ref, w2t_ref, b_ref, v_ref,
                      ctx_ref, aw_ref):
    # Per grid step (one batch tile):
    #   ht_ref : (TB, H)      enc_ref: (TB, S, H)
    #   w1t/w2t: (H, H) pre-transposed halves of attn.weight (resident)
    #   b_ref  : (1, H)       v_ref  : (1, H)
    #   ctx_ref: (TB, Hp)     aw_ref : (TB, Sp)   (lane-padded when H/S < 128)
    TB, S, H = enc_ref.shape
    Hp = ctx_ref.shape[-1]
    Sp = aw_ref.shape[-1]

    ht = ht_ref[...]                                              # (TB, H)
    enc = enc_ref[...]                                            # (TB, S, H)

    # --- MXU: shared-weight projections -----------------------------------
    ht_proj = jnp.dot(ht, w1t_ref[...],
                      preferred_element_type=jnp.float32)         # (TB, H)
    # Layout-preserving reshape when S % 8 == 0 (true for typical seq lens);
    # otherwise Mosaic inserts a tile relayout -- pad S upstream if that bites.
    enc_proj = jnp.dot(enc.reshape(TB * S, H), w2t_ref[...],
                       preferred_element_type=jnp.float32)        # (TB*S, H)
    enc_proj = enc_proj.reshape(TB, S, H)

    # --- VPU: energy = relu(ht_proj + b + enc_proj); ht part hoisted -------
    htb = ht_proj + b_ref[...]                                    # (TB, H)
    energy = jnp.maximum(enc_proj + htb[:, None, :], 0.0)         # (TB, S, H)

    # --- VPU/XLU (not a 1-wide MXU matmul): scores = energy . v ------------
    scores = jnp.sum(energy * v_ref[...], axis=-1)                # (TB, S)

    # Softmax over the sequence (lane) axis; EUP approx reciprocal + one
    # Newton refinement step (on a (TB,1) vector -> negligible VALU cost)
    # keeps full f32 accuracy while the expensive part rides the EUP slot.
    m = jnp.max(scores, axis=-1, keepdims=True)
    p = jnp.exp(scores - m)
    denom = jnp.sum(p, axis=-1, keepdims=True)                    # >= 1
    inv = pl.reciprocal(denom, approx=True)
    inv = inv * (2.0 - denom * inv)
    aw = p * inv                                                  # (TB, S)

    # --- VPU/XLU: context = sum_s aw[b,s] * enc[b,s,:] ----------------------
    context = jnp.sum(aw[:, :, None] * enc, axis=1)               # (TB, H)

    # Lane-pad narrow outputs to a dense 128-wide slab (single unmasked vst).
    if Hp != H:
        context = jnp.concatenate(
            [context, jnp.zeros((TB, Hp - H), context.dtype)], axis=-1)
    if Sp != S:
        aw = jnp.concatenate(
            [aw, jnp.zeros((TB, Sp - S), aw.dtype)], axis=-1)

    ctx_ref[...] = context.astype(ctx_ref.dtype)
    aw_ref[...] = aw.astype(aw_ref.dtype)


def _forward_pallas(ht2d, enc, w1t, w2t, b2d, v2d, *, single_buffer_consts):
    B, S, H = enc.shape
    dt = enc.dtype
    Hp = H if H >= 128 else 128        # lane-dense output slabs for narrow dims
    Sp = S if S >= 128 else 128

    vmem_limit, tile_budget = _vmem_budget_bytes()
    TB = _choose_tb(B, S, H, Sp, Hp, tile_budget)

    def const_spec(shape):
        # Constant index_map -> DMA'd once; single buffer frees ~2*H*H*4 bytes.
        if single_buffer_consts:
            return pl.BlockSpec(shape, lambda i: (0,) * len(shape),
                                pipeline_mode=pl.Buffered(1))
        return pl.BlockSpec(shape, lambda i: (0,) * len(shape))

    return pl.pallas_call(
        _attention_kernel,
        out_shape=(
            jax.ShapeDtypeStruct((B, Hp), dt),
            jax.ShapeDtypeStruct((B, Sp), dt),
        ),
        grid_spec=pltpu.PrefetchScalarGridSpec(
            num_scalar_prefetch=0,
            grid=(pl.cdiv(B, TB),),               # ragged last block, no pad copy
            in_specs=[
                pl.BlockSpec((TB, H), lambda i: (i, 0)),        # ht (batch tile)
                pl.BlockSpec((TB, S, H), lambda i: (i, 0, 0)),  # encoder_out tile
                const_spec((H, H)),                             # W1^T (resident)
                const_spec((H, H)),                             # W2^T (resident)
                const_spec((1, H)),                             # bias (resident)
                const_spec((1, H)),                             # v    (resident)
            ],
            out_specs=[
                pl.BlockSpec((TB, Hp), lambda i: (i, 0)),       # context slab
                pl.BlockSpec((TB, Sp), lambda i: (i, 0)),       # attn-weight slab
            ],
        ),
        compiler_params=pltpu.CompilerParams(
            dimension_semantics=("parallel",),
            vmem_limit_bytes=int(vmem_limit)),
    )(ht2d, enc, w1t, w2t, b2d, v2d)


def prepare_attention_params(params, hidden_units):
    """One-time parameter prep: pre-transpose the weight halves so the per-call
    graph carries no HxH transposes."""
    H = hidden_units
    w = params["attn_w"]                       # (H, 2H) == nn.Linear(2H, H).weight
    return {
        "w1t": jnp.asarray(w[:, :H].T),        # (H, H) acts on repeated ht
        "w2t": jnp.asarray(w[:, H:].T),        # (H, H) acts on encoder_out
        "b": params["attn_b"].reshape(1, H),
        "v": params["v_w"].reshape(1, H),      # (1, H) == nn.Linear(H, 1).weight
    }


def attention_network_bert(ht, encoder_out, prep):
    """ht: (1, B, H) f32; encoder_out: (B, S, H) f32; prep: prepare_attention_params.
    Returns (context (B, 1, H), attention_weights (B, 1, S))."""
    B, S, H = encoder_out.shape
    ht2d = ht.reshape(B, H)                    # (1,B,H) -> (B,H), no copy needed

    try:
        ctx2d, aw2d = _forward_pallas(ht2d, encoder_out,
                                      prep["w1t"], prep["w2t"], prep["b"], prep["v"],
                                      single_buffer_consts=True)
    except Exception:
        # Fallback if pipeline_mode=pl.Buffered(1) is unsupported in this JAX build.
        ctx2d, aw2d = _forward_pallas(ht2d, encoder_out,
                                      prep["w1t"], prep["w2t"], prep["b"], prep["v"],
                                      single_buffer_consts=False)

    context = ctx2d[:, :H].reshape(B, 1, H)
    attention_weights = aw2d[:, :S].reshape(B, 1, S)
    return context, attention_weights


def _reference(ht, encoder_out, params):
    """Pure-JAX replica of the PyTorch forward (for correctness check)."""
    B, S, H = encoder_out.shape
    ht_rep = jnp.transpose(jnp.tile(ht, (S, 1, 1)), (1, 0, 2))     # (B, S, H)
    energy = jnp.concatenate([ht_rep, encoder_out], axis=2)        # (B, S, 2H)
    energy = energy @ params["attn_w"].T + params["attn_b"]        # (B, S, H)
    energy = jnp.maximum(energy, 0.0)
    attention = (energy @ params["v_w"].T)[..., 0]                 # (B, S)
    aw = jax.nn.softmax(attention, axis=1)[:, None, :]             # (B, 1, S)
    context = jnp.einsum("bos,bsh->boh", aw, encoder_out)          # (B, 1, H)
    return context, aw


def _init_params(key, hidden_units):
    """Deterministic init matching nn.Linear default (uniform +/- 1/sqrt(fan_in))."""
    k1, k2, k3 = jax.random.split(key, 3)
    H = hidden_units
    bound_attn = 1.0 / jnp.sqrt(2.0 * H)
    bound_v = 1.0 / jnp.sqrt(1.0 * H)
    return {
        "attn_w": jax.random.uniform(k1, (H, 2 * H), jnp.float32,
                                     -bound_attn, bound_attn),
        "attn_b": jax.random.uniform(k2, (H,), jnp.float32,
                                     -bound_attn, bound_attn),
        "v_w": jax.random.uniform(k3, (1, H), jnp.float32,
                                  -bound_v, bound_v),
    }


if __name__ == "__main__":
    B, S, H = 2, 8, 32   # batch, encoder sequence length, hidden_units

    key = jax.random.PRNGKey(0)
    kp, kh, ke = jax.random.split(key, 3)
    params = _init_params(kp, H)
    prep = prepare_attention_params(params, H)     # one-time weight prep
    ht = jax.random.normal(kh, (1, B, H), jnp.float32)          # decoder hidden
    encoder_out = jax.random.normal(ke, (B, S, H), jnp.float32)

    ctx, aw = attention_network_bert(ht, encoder_out, prep)
    jax.block_until_ready((ctx, aw))

    ctx_ref, aw_ref = _reference(ht, encoder_out, params)
    assert ctx.shape == (B, 1, H) and aw.shape == (B, 1, S)
    assert jnp.allclose(ctx, ctx_ref, atol=2e-5, rtol=1e-4)
    assert jnp.allclose(aw, aw_ref, atol=2e-5, rtol=1e-4)

    print("KERNEL_OK")
</pallas_src>

<mosaic_0001>
module attributes {stable_mosaic.version = 11 : i64} {
  func.func @_attention_kernel(%arg0: i32, %arg1: memref<2x32xf32, #tpu.memory_space<vmem>>, %arg2: memref<2x8x32xf32, #tpu.memory_space<vmem>>, %arg3: memref<32x32xf32, #tpu.memory_space<vmem>>, %arg4: memref<32x32xf32, #tpu.memory_space<vmem>>, %arg5: memref<1x32xf32, #tpu.memory_space<vmem>>, %arg6: memref<1x32xf32, #tpu.memory_space<vmem>>, %arg7: memref<2x128xf32, #tpu.memory_space<vmem>>, %arg8: memref<2x128xf32, #tpu.memory_space<vmem>>) attributes {dimension_semantics = [#tpu.dimension_semantics<parallel>], iteration_bounds = array<i64: 1>, scalar_prefetch = 0 : i64, scratch_operands = 0 : i64, tpu.core_type = #tpu.core_type<tc>, window_params = [{transform_indices = @transform_0, window_bounds = array<i64: 2, 32>}, {transform_indices = @transform_1, window_bounds = array<i64: 2, 8, 32>}, {pipeline_mode = #tpu.pipeline_mode<synchronous>, transform_indices = @transform_2, window_bounds = array<i64: 32, 32>}, {pipeline_mode = #tpu.pipeline_mode<synchronous>, transform_indices = @transform_3, window_bounds = array<i64: 32, 32>}, {pipeline_mode = #tpu.pipeline_mode<synchronous>, transform_indices = @transform_4, window_bounds = array<i64: 1, 32>}, {pipeline_mode = #tpu.pipeline_mode<synchronous>, transform_indices = @transform_5, window_bounds = array<i64: 1, 32>}, {transform_indices = @transform_6, window_bounds = array<i64: 2, 128>}, {transform_indices = @transform_7, window_bounds = array<i64: 2, 128>}]} {
    %c0 = arith.constant 0 : index
    %c0_0 = arith.constant 0 : index
    %0 = vector.load %arg1[%c0, %c0_0] : memref<2x32xf32, #tpu.memory_space<vmem>>, vector<2x32xf32>
    %c0_1 = arith.constant 0 : index
    %c0_2 = arith.constant 0 : index
    %c0_3 = arith.constant 0 : index
    %1 = vector.load %arg2[%c0_1, %c0_2, %c0_3] : memref<2x8x32xf32, #tpu.memory_space<vmem>>, vector<2x8x32xf32>
    %c0_4 = arith.constant 0 : index
    %c0_5 = arith.constant 0 : index
    %2 = vector.load %arg3[%c0_4, %c0_5] : memref<32x32xf32, #tpu.memory_space<vmem>>, vector<32x32xf32>
    %cst = arith.constant dense<0.000000e+00> : vector<2x32xf32>
    %3 = tpu.matmul %0, %2, %cst {dimension_numbers = #tpu.dot_dimension_numbers<[1], [0], [0], [1], [0, 0, 1, 1], [], []>} : vector<2x32xf32>, vector<32x32xf32>, vector<2x32xf32> -> vector<2x32xf32>
    %4 = vector.shape_cast %1 : vector<2x8x32xf32> to vector<16x32xf32>
    %c0_6 = arith.constant 0 : index
    %c0_7 = arith.constant 0 : index
    %5 = vector.load %arg4[%c0_6, %c0_7] : memref<32x32xf32, #tpu.memory_space<vmem>>, vector<32x32xf32>
    %cst_8 = arith.constant dense<0.000000e+00> : vector<16x32xf32>
    %6 = tpu.matmul %4, %5, %cst_8 {dimension_numbers = #tpu.dot_dimension_numbers<[1], [0], [0], [1], [0, 0, 1, 1], [], []>} : vector<16x32xf32>, vector<32x32xf32>, vector<16x32xf32> -> vector<16x32xf32>
    %7 = vector.shape_cast %6 : vector<16x32xf32> to vector<2x8x32xf32>
    %c0_9 = arith.constant 0 : index
    %c0_10 = arith.constant 0 : index
    %8 = vector.load %arg5[%c0_9, %c0_10] : memref<1x32xf32, #tpu.memory_space<vmem>>, vector<1x32xf32>
    %9 = vector.broadcast %8 : vector<1x32xf32> to vector<2x32xf32>
    %10 = arith.addf %3, %9 : vector<2x32xf32>
    %11 = vector.shape_cast %10 : vector<2x32xf32> to vector<2x1x32xf32>
    %12 = vector.broadcast %11 : vector<2x1x32xf32> to vector<2x8x32xf32>
    %13 = arith.addf %7, %12 : vector<2x8x32xf32>
    %cst_11 = arith.constant 0.000000e+00 : f32
    %14 = vector.broadcast %cst_11 : f32 to vector<2x8x32xf32>
    %15 = arith.maximumf %13, %14 : vector<2x8x32xf32>
    %c0_12 = arith.constant 0 : index
    %c0_13 = arith.constant 0 : index
    %16 = vector.load %arg6[%c0_12, %c0_13] : memref<1x32xf32, #tpu.memory_space<vmem>>, vector<1x32xf32>
    %17 = vector.shape_cast %16 : vector<1x32xf32> to vector<1x1x32xf32>
    %18 = vector.broadcast %17 : vector<1x1x32xf32> to vector<2x8x32xf32>
    %19 = arith.mulf %15, %18 : vector<2x8x32xf32>
    %cst_14 = arith.constant dense<0.000000e+00> : vector<2x8xf32>
    %20 = vector.multi_reduction <add>, %19, %cst_14 [2] : vector<2x8x32xf32> to vector<2x8xf32>
    %cst_15 = arith.constant dense<0xFF800000> : vector<2xf32>
    %21 = vector.multi_reduction <maximumf>, %20, %cst_15 [1] : vector<2x8xf32> to vector<2xf32>
    %22 = vector.shape_cast %21 : vector<2xf32> to vector<2x1xf32>
    %23 = vector.broadcast %22 : vector<2x1xf32> to vector<2x8xf32>
    %24 = arith.subf %20, %23 : vector<2x8xf32>
    %25 = math.exp %24 : vector<2x8xf32>
    %cst_16 = arith.constant dense<0.000000e+00> : vector<2xf32>
    %26 = vector.multi_reduction <add>, %25, %cst_16 [1] : vector<2x8xf32> to vector<2xf32>
    %27 = vector.shape_cast %26 : vector<2xf32> to vector<2x1xf32>
    %28 = tpu.reciprocal %27 {approx = true} : vector<2x1xf32> -> vector<2x1xf32>
    %29 = arith.mulf %27, %28 : vector<2x1xf32>
    %cst_17 = arith.constant 2.000000e+00 : f32
    %30 = vector.broadcast %cst_17 : f32 to vector<2x1xf32>
    %31 = arith.subf %30, %29 : vector<2x1xf32>
    %32 = arith.mulf %28, %31 : vector<2x1xf32>
    %33 = vector.broadcast %32 : vector<2x1xf32> to vector<2x8xf32>
    %34 = arith.mulf %25, %33 : vector<2x8xf32>
    %35 = vector.shape_cast %34 : vector<2x8xf32> to vector<2x8x1xf32>
    %36 = vector.broadcast %35 : vector<2x8x1xf32> to vector<2x8x32xf32>
    %37 = arith.mulf %36, %1 : vector<2x8x32xf32>
    %cst_18 = arith.constant dense<0.000000e+00> : vector<2x32xf32>
    %38 = vector.multi_reduction <add>, %37, %cst_18 [1] : vector<2x8x32xf32> to vector<2x32xf32>
    %cst_19 = arith.constant 0.000000e+00 : f32
    %39 = vector.broadcast %cst_19 : f32 to vector<2x96xf32>
    %40 = tpu.concatenate %38, %39 in 1 : vector<2x32xf32>, vector<2x96xf32> -> vector<2x128xf32>
    %cst_20 = arith.constant 0.000000e+00 : f32
    %41 = vector.broadcast %cst_20 : f32 to vector<2x120xf32>
    %42 = tpu.concatenate %34, %41 in 1 : vector<2x8xf32>, vector<2x120xf32> -> vector<2x128xf32>
    %c0_21 = arith.constant 0 : index
    %c0_22 = arith.constant 0 : index
    %43 = vector.load %arg7[%c0_21, %c0_22] : memref<2x128xf32, #tpu.memory_space<vmem>>, vector<2x128xf32>
    tpu.vector_store %arg7[%c0_21, %c0_22], %40 {strides = array<i32>} : memref<2x128xf32, #tpu.memory_space<vmem>>, vector<2x128xf32>,
    %c0_23 = arith.constant 0 : index
    %c0_24 = arith.constant 0 : index
    %44 = vector.load %arg8[%c0_23, %c0_24] : memref<2x128xf32, #tpu.memory_space<vmem>>, vector<2x128xf32>
    tpu.vector_store %arg8[%c0_23, %c0_24], %42 {strides = array<i32>} : memref<2x128xf32, #tpu.memory_space<vmem>>, vector<2x128xf32>,
    return
  }
  func.func @transform_0(%arg0: i32) -> (i32, i32) {
    %c0_i32 = arith.constant 0 : i32
    %c0_i32_0 = arith.constant 0 : i32
    return %arg0, %c0_i32 : i32, i32
  }
  func.func @transform_1(%arg0: i32) -> (i32, i32, i32) {
    %c0_i32 = arith.constant 0 : i32
    %c0_i32_0 = arith.constant 0 : i32
    %c0_i32_1 = arith.constant 0 : i32
    return %arg0, %c0_i32, %c0_i32_0 : i32, i32, i32
  }
  func.func @transform_2(%arg0: i32) -> (i32, i32) {
    %c0_i32 = arith.constant 0 : i32
    %c0_i32_0 = arith.constant 0 : i32
    %c0_i32_1 = arith.constant 0 : i32
    return %c0_i32, %c0_i32_0 : i32, i32
  }
  func.func @transform_3(%arg0: i32) -> (i32, i32) {
    %c0_i32 = arith.constant 0 : i32
    %c0_i32_0 = arith.constant 0 : i32
    %c0_i32_1 = arith.constant 0 : i32
    return %c0_i32, %c0_i32_0 : i32, i32
  }
  func.func @transform_4(%arg0: i32) -> (i32, i32) {
    %c0_i32 = arith.constant 0 : i32
    %c0_i32_0 = arith.constant 0 : i32
    %c0_i32_1 = arith.constant 0 : i32
    return %c0_i32, %c0_i32_0 : i32, i32
  }
  func.func @transform_5(%arg0: i32) -> (i32, i32) {
    %c0_i32 = arith.constant 0 : i32
    %c0_i32_0 = arith.constant 0 : i32
    %c0_i32_1 = arith.constant 0 : i32
    return %c0_i32, %c0_i32_0 : i32, i32
  }
  func.func @transform_6(%arg0: i32) -> (i32, i32) {
    %c0_i32 = arith.constant 0 : i32
    %c0_i32_0 = arith.constant 0 : i32
    return %arg0, %c0_i32 : i32, i32
  }
  func.func @transform_7(%arg0: i32) -> (i32, i32) {
    %c0_i32 = arith.constant 0 : i32
    %c0_i32_0 = arith.constant 0 : i32
    return %arg0, %c0_i32 : i32, i32
  }
}

module attributes {stable_mosaic.version = 11 : i64} {
  func.func @_attention_kernel(%arg0: i32, %arg1: memref<2x32xf32, #tpu.memory_space<vmem>>, %arg2: memref<2x8x32xf32, #tpu.memory_space<vmem>>, %arg3: memref<32x32xf32, #tpu.memory_space<vmem>>, %arg4: memref<32x32xf32, #tpu.memory_space<vmem>>, %arg5: memref<1x32xf32, #tpu.memory_space<vmem>>, %arg6: memref<1x32xf32, #tpu.memory_space<vmem>>, %arg7: memref<2x128xf32, #tpu.memory_space<vmem>>, %arg8: memref<2x128xf32, #tpu.memory_space<vmem>>) attributes {dimension_semantics = [#tpu.dimension_semantics<parallel>], iteration_bounds = array<i64: 1>, scalar_prefetch = 0 : i64, scratch_operands = 0 : i64, tpu.core_type = #tpu.core_type<tc>, window_params = [{transform_indices = @transform_0, window_bounds = array<i64: 2, 32>}, {transform_indices = @transform_1, window_bounds = array<i64: 2, 8, 32>}, {pipeline_mode = #tpu.pipeline_mode<synchronous>, transform_indices = @transform_2, window_bounds = array<i64: 32, 32>}, {pipeline_mode = #tpu.pipeline_mode<synchronous>, transform_indices = @transform_3, window_bounds = array<i64: 32, 32>}, {pipeline_mode = #tpu.pipeline_mode<synchronous>, transform_indices = @transform_4, window_bounds = array<i64: 1, 32>}, {pipeline_mode = #tpu.pipeline_mode<synchronous>, transform_indices = @transform_5, window_bounds = array<i64: 1, 32>}, {transform_indices = @transform_6, window_bounds = array<i64: 2, 128>}, {transform_indices = @transform_7, window_bounds = array<i64: 2, 128>}]} {
    %c0 = arith.constant 0 : index
    %c0_0 = arith.constant 0 : index
    %0 = vector.load %arg1[%c0, %c0_0] : memref<2x32xf32, #tpu.memory_space<vmem>>, vector<2x32xf32>
    %c0_1 = arith.constant 0 : index
    %c0_2 = arith.constant 0 : index
    %c0_3 = arith.constant 0 : index
    %1 = vector.load %arg2[%c0_1, %c0_2, %c0_3] : memref<2x8x32xf32, #tpu.memory_space<vmem>>, vector<2x8x32xf32>
    %c0_4 = arith.constant 0 : index
    %c0_5 = arith.constant 0 : index
    %2 = vector.load %arg3[%c0_4, %c0_5] : memref<32x32xf32, #tpu.memory_space<vmem>>, vector<32x32xf32>
    %cst = arith.constant dense<0.000000e+00> : vector<2x32xf32>
    %3 = tpu.matmul %0, %2, %cst {dimension_numbers = #tpu.dot_dimension_numbers<[1], [0], [0], [1], [0, 0, 1, 1], [], []>} : vector<2x32xf32>, vector<32x32xf32>, vector<2x32xf32> -> vector<2x32xf32>
    %4 = vector.shape_cast %1 : vector<2x8x32xf32> to vector<16x32xf32>
    %c0_6 = arith.constant 0 : index
    %c0_7 = arith.constant 0 : index
    %5 = vector.load %arg4[%c0_6, %c0_7] : memref<32x32xf32, #tpu.memory_space<vmem>>, vector<32x32xf32>
    %cst_8 = arith.constant dense<0.000000e+00> : vector<16x32xf32>
    %6 = tpu.matmul %4, %5, %cst_8 {dimension_numbers = #tpu.dot_dimension_numbers<[1], [0], [0], [1], [0, 0, 1, 1], [], []>} : vector<16x32xf32>, vector<32x32xf32>, vector<16x32xf32> -> vector<16x32xf32>
    %7 = vector.shape_cast %6 : vector<16x32xf32> to vector<2x8x32xf32>
    %c0_9 = arith.constant 0 : index
    %c0_10 = arith.constant 0 : index
    %8 = vector.load %arg5[%c0_9, %c0_10] : memref<1x32xf32, #tpu.memory_space<vmem>>, vector<1x32xf32>
    %9 = vector.broadcast %8 : vector<1x32xf32> to vector<2x32xf32>
    %10 = arith.addf %3, %9 : vector<2x32xf32>
    %11 = vector.shape_cast %10 : vector<2x32xf32> to vector<2x1x32xf32>
    %12 = vector.broadcast %11 : vector<2x1x32xf32> to vector<2x8x32xf32>
    %13 = arith.addf %7, %12 : vector<2x8x32xf32>
    %cst_11 = arith.constant 0.000000e+00 : f32
    %14 = vector.broadcast %cst_11 : f32 to vector<2x8x32xf32>
    %15 = arith.maximumf %13, %14 : vector<2x8x32xf32>
    %c0_12 = arith.constant 0 : index
    %c0_13 = arith.constant 0 : index
    %16 = vector.load %arg6[%c0_12, %c0_13] : memref<1x32xf32, #tpu.memory_space<vmem>>, vector<1x32xf32>
    %17 = vector.shape_cast %16 : vector<1x32xf32> to vector<1x1x32xf32>
    %18 = vector.broadcast %17 : vector<1x1x32xf32> to vector<2x8x32xf32>
    %19 = arith.mulf %15, %18 : vector<2x8x32xf32>
    %cst_14 = arith.constant dense<0.000000e+00> : vector<2x8xf32>
    %20 = vector.multi_reduction <add>, %19, %cst_14 [2] : vector<2x8x32xf32> to vector<2x8xf32>
    %cst_15 = arith.constant dense<0xFF800000> : vector<2xf32>
    %21 = vector.multi_reduction <maximumf>, %20, %cst_15 [1] : vector<2x8xf32> to vector<2xf32>
    %22 = vector.shape_cast %21 : vector<2xf32> to vector<2x1xf32>
    %23 = vector.broadcast %22 : vector<2x1xf32> to vector<2x8xf32>
    %24 = arith.subf %20, %23 : vector<2x8xf32>
    %25 = math.exp %24 : vector<2x8xf32>
    %cst_16 = arith.constant dense<0.000000e+00> : vector<2xf32>
    %26 = vector.multi_reduction <add>, %25, %cst_16 [1] : vector<2x8xf32> to vector<2xf32>
    %27 = vector.shape_cast %26 : vector<2xf32> to vector<2x1xf32>
    %28 = tpu.reciprocal %27 {approx = true} : vector<2x1xf32> -> vector<2x1xf32>
    %29 = arith.mulf %27, %28 : vector<2x1xf32>
    %cst_17 = arith.constant 2.000000e+00 : f32
    %30 = vector.broadcast %cst_17 : f32 to vector<2x1xf32>
    %31 = arith.subf %30, %29 : vector<2x1xf32>
    %32 = arith.mulf %28, %31 : vector<2x1xf32>
    %33 = vector.broadcast %32 : vector<2x1xf32> to vector<2x8xf32>
    %34 = arith.mulf %25, %33 : vector<2x8xf32>
    %35 = vector.shape_cast %34 : vector<2x8xf32> to vector<2x8x1xf32>
    %36 = vector.broadcast %35 : vector<2x8x1xf32> to vector<2x8x32xf32>
    %37 = arith.mulf %36, %1 : vector<2x8x32xf32>
    %cst_18 = arith.constant dense<0.000000e+00> : vector<2x32xf32>
    %38 = vector.multi_reduction <add>, %37, %cst_18 [1] : vector<2x8x32xf32> to vector<2x32xf32>
    %cst_19 = arith.constant 0.000000e+00 : f32
    %39 = vector.broadcast %cst_19 : f32 to vector<2x96xf32>
    %40 = tpu.concatenate %38, %39 in 1 : vector<2x32xf32>, vector<2x96xf32> -> vector<2x128xf32>
    %cst_20 = arith.constant 0.000000e+00 : f32
    %41 = vector.broadcast %cst_20 : f32 to vector<2x120xf32>
    %42 = tpu.concatenate %34, %41 in 1 : vector<2x8xf32>, vector<2x120xf32> -> vector<2x128xf32>
    %c0_21 = arith.constant 0 : index
    %c0_22 = arith.constant 0 : index
    %43 = vector.load %arg7[%c0_21, %c0_22] : memref<2x128xf32, #tpu.memory_space<vmem>>, vector<2x128xf32>
    tpu.vector_store %arg7[%c0_21, %c0_22], %40 {strides = array<i32>} : memref<2x128xf32, #tpu.memory_space<vmem>>, vector<2x128xf32>,
    %c0_23 = arith.constant 0 : index
    %c0_24 = arith.constant 0 : index
    %44 = vector.load %arg8[%c0_23, %c0_24] : memref<2x128xf32, #tpu.memory_space<vmem>>, vector<2x128xf32>
    tpu.vector_store %arg8[%c0_23, %c0_24], %42 {strides = array<i32>} : memref<2x128xf32, #tpu.memory_space<vmem>>, vector<2x128xf32>,
    return
  }
  func.func @transform_0(%arg0: i32) -> (i32, i32) {
    %c0_i32 = arith.constant 0 : i32
    %c0_i32_0 = arith.constant 0 : i32
    return %arg0, %c0_i32 : i32, i32
  }
  func.func @transform_1(%arg0: i32) -> (i32, i32, i32) {
    %c0_i32 = arith.constant 0 : i32
    %c0_i32_0 = arith.constant 0 : i32
    %c0_i32_1 = arith.constant 0 : i32
    return %arg0, %c0_i32, %c0_i32_0 : i32, i32, i32
  }
  func.func @transform_2(%arg0: i32) -> (i32, i32) {
    %c0_i32 = arith.constant 0 : i32
    %c0_i32_0 = arith.constant 0 : i32
    %c0_i32_1 = arith.constant 0 : i32
    return %c0_i32, %c0_i32_0 : i32, i32
  }
  func.func @transform_3(%arg0: i32) -> (i32, i32) {
    %c0_i32 = arith.constant 0 : i32
    %c0_i32_0 = arith.constant 0 : i32
    %c0_i32_1 = arith.constant 0 : i32
    return %c0_i32, %c0_i32_0 : i32, i32
  }
  func.func @transform_4(%arg0: i32) -> (i32, i32) {
    %c0_i32 = arith.constant 0 : i32
    %c0_i32_0 = arith.constant 0 : i32
    %c0_i32_1 = arith.constant 0 : i32
    return %c0_i32, %c0_i32_0 : i32, i32
  }
  func.func @transform_5(%arg0: i32) -> (i32, i32) {
    %c0_i32 = arith.constant 0 : i32
    %c0_i32_0 = arith.constant 0 : i32
    %c0_i32_1 = arith.constant 0 : i32
    return %c0_i32, %c0_i32_0 : i32, i32
  }
  func.func @transform_6(%arg0: i32) -> (i32, i32) {
    %c0_i32 = arith.constant 0 : i32
    %c0_i32_0 = arith.constant 0 : i32
    return %arg0, %c0_i32 : i32, i32
  }
  func.func @transform_7(%arg0: i32) -> (i32, i32) {
    %c0_i32 = arith.constant 0 : i32
    %c0_i32_0 = arith.constant 0 : i32
    return %arg0, %c0_i32 : i32, i32
  }
}

</mosaic_0001>

<llo_original>
// kernel: tpu_custom_call.1
$region0: #{tpu_custom_call.1}
  #allocation0 [shape = 'u32[]', space=smem, size = 0x4, offset = 0x4, fixed_abs, tag = 'smem constant byte address 0x4 - core index']
  #allocation1 [shape = 'u32[144,128]{1,0:T(1,128)}', space=vmem, size = 0x12000, scoped, tag = 'internal scratch']
  %s0 = inlined_call_operand.hbm [shape: f32[2,32], index: 0, kind: input, shape index: {}]
  %s1 = inlined_call_operand.hbm [shape: f32[2,8,32], index: 1, kind: input, shape index: {}]
  %s2 = inlined_call_operand.hbm [shape: f32[32,32], index: 2, kind: input, shape index: {}]
  %s3 = inlined_call_operand.hbm [shape: f32[32,32], index: 3, kind: input, shape index: {}]
  %s4 = inlined_call_operand.vmem [shape: f32[1,32], index: 4, kind: input, shape index: {}]
  %s5 = inlined_call_operand.vmem [shape: f32[1,32], index: 5, kind: input, shape index: {}]
  %s6 = inlined_call_operand.hbm [shape: f32[2,128], index: 6, kind: output, shape index: {0}]
  %s7 = inlined_call_operand.hbm [shape: f32[2,128], index: 7, kind: output, shape index: {1}]
  %8 = xla_tuple %s6, %s7
  %s9 = sld [smem:[#allocation0]]
  $region58: #{tpu_custom_call.1} parent=0
    _
  %s11 = ssub.s32 1, %s9
  %s12 = scalar_select 0, %s11, %s9
  $region1: #{tpu_custom_call.1} parent=0
    #allocation2 [shape = 'u8[1024]{0}', space=vmem, size = 0x400, scoped, tag = 'input window, operand 0, single buffered']
    #allocation3 [shape = 's32[1]{0}', space=sflag, size = 0x4, scoped, tag = 'scoped memory for tpu_custom_call.1']
    #allocation4 [shape = 's32[1]{0}', space=sflag, size = 0x4, scoped, tag = 'scoped memory for tpu_custom_call.1']
    #allocation5 [shape = 'u8[8192]{0}', space=vmem, size = 0x2000, scoped, tag = 'input window, operand 1, single buffered']
    #allocation6 [shape = 's32[1]{0}', space=sflag, size = 0x4, scoped, tag = 'scoped memory for tpu_custom_call.1']
    #allocation7 [shape = 'u8[16384]{0}', space=vmem, size = 0x4000, scoped, tag = 'input window, operand 2, single buffered']
    #allocation8 [shape = 'u8[16384]{0}', space=vmem, size = 0x4000, scoped, tag = 'input window, operand 3, single buffered']
    #allocation9 [shape = 's32[1]{0}', space=sflag, size = 0x4, scoped, tag = 'scoped memory for tpu_custom_call.1']
    #allocation10 [shape = 'u8[1024]{0}', space=vmem, size = 0x400, scoped, tag = 'output window, operand 0, single buffered']
    #allocation11 [shape = 'u8[1024]{0}', space=vmem, size = 0x400, scoped, tag = 'output window, operand 1, single buffered']
    #allocation12 [shape = 's32[1]{0}', space=sflag, size = 0x4, scoped, tag = 'scoped memory for tpu_custom_call.1']
    %13 = vsyncpa [#allocation3], 0
    %14 = vsyncpa [#allocation6], 0
    %15 = vsyncpa [#allocation9], 0
    %16 = vsyncpa [#allocation4], 0
    %17 = vsyncpa [#allocation12], 0
    // Predicated region
    $region2: #{tpu_custom_call.1} parent=1 // pred_check
      _
    $region3: #{tpu_custom_call.1} parent=1 // pred_check_branch
      %19 = sbr.rel (0) target = $region5
    $region4: #{tpu_custom_call.1} parent=1 // pred_region
      %s21 = ssub.s32 32, 32
      %22 = vsyncadd [#allocation3], %s21
      %s24 = sshll.u32 [#allocation2], 4
      %s25 = int_to_ptr.vmem [resolvable:$true] %s24
      %27 = dma.hbm_to_vmem [thread:$0]  %s0, 32, %s25, [#allocation3]
    $region5: #{tpu_custom_call.1} parent=1 // pred_fallthru
      _
    // Predicated region
    $region6: #{tpu_custom_call.1} parent=1 // pred_check
      _
    $region7: #{tpu_custom_call.1} parent=1 // pred_check_branch
      %29 = sbr.rel (0) target = $region9
    $region8: #{tpu_custom_call.1} parent=1 // pred_region
      %s31 = ssub.s32 256, 256
      %32 = vsyncadd [#allocation6], %s31
      %s33 = sshll.u32 [#allocation5], 4
      %s34 = int_to_ptr.vmem [resolvable:$true] %s33
      %39 = dma.hbm_to_vmem [thread:$0]  %s1, 256, %s34, [#allocation6], 128, 128, 8
    $region9: #{tpu_custom_call.1} parent=1 // pred_fallthru
      _
    // Predicated region
    $region10: #{tpu_custom_call.1} parent=1 // pred_check
      _
    $region11: #{tpu_custom_call.1} parent=1 // pred_check_branch
      %41 = sbr.rel (0) target = $region13
    $region12: #{tpu_custom_call.1} parent=1 // pred_region
      %s43 = ssub.s32 512, 512
      %44 = vsyncadd [#allocation6], %s43
      %s45 = sshll.u32 [#allocation7], 4
      %s46 = int_to_ptr.vmem [resolvable:$true] %s45
      %51 = dma.hbm_to_vmem [thread:$0]  %s2, 512, %s46, [#allocation6], 128, 128, 8
    $region13: #{tpu_custom_call.1} parent=1 // pred_fallthru
      _
    // Predicated region
    $region14: #{tpu_custom_call.1} parent=1 // pred_check
      _
    $region15: #{tpu_custom_call.1} parent=1 // pred_check_branch
      %53 = sbr.rel (0) target = $region17
    $region16: #{tpu_custom_call.1} parent=1 // pred_region
      %s55 = ssub.s32 512, 512
      %56 = vsyncadd [#allocation9], %s55
      %s57 = sshll.u32 [#allocation8], 4
      %s58 = int_to_ptr.vmem [resolvable:$true] %s57
      %63 = dma.hbm_to_vmem [thread:$0]  %s3, 512, %s58, [#allocation9], 128, 128, 8
    $region17: #{tpu_custom_call.1} parent=1 // pred_fallthru
      _
    // Predicated region
    $region18: #{tpu_custom_call.1} parent=1 // pred_check
      _
    $region19: #{tpu_custom_call.1} parent=1 // pred_check_branch
      %65 = sbr.rel (0) target = $region21
    $region20: #{tpu_custom_call.1} parent=1 // pred_region
      _
    $region21: #{tpu_custom_call.1} parent=1 // pred_fallthru
      _
    // Predicated region
    $region22: #{tpu_custom_call.1} parent=1 // pred_check
      _
    $region23: #{tpu_custom_call.1} parent=1 // pred_check_branch
      %67 = sbr.rel (0) target = $region25
    $region24: #{tpu_custom_call.1} parent=1 // pred_region
      _
    $region25: #{tpu_custom_call.1} parent=1 // pred_fallthru
      _
    // Predicated region
    $region26: #{tpu_custom_call.1} parent=1 // pred_check
      _
    $region27: #{tpu_custom_call.1} parent=1 // pred_check_branch
      %69 = sbr.rel (0) target = $region29
    $region28: #{tpu_custom_call.1} parent=1 // pred_region
      %70 = dma.done [#allocation3], 32
    $region29: #{tpu_custom_call.1} parent=1 // pred_fallthru
      _
    // Predicated region
    $region30: #{tpu_custom_call.1} parent=1 // pred_check
      _
    $region31: #{tpu_custom_call.1} parent=1 // pred_check_branch
      %72 = sbr.rel (0) target = $region33
    $region32: #{tpu_custom_call.1} parent=1 // pred_region
      %73 = dma.done [#allocation6], 256
    $region33: #{tpu_custom_call.1} parent=1 // pred_fallthru
      _
    // Predicated region
    $region34: #{tpu_custom_call.1} parent=1 // pred_check
      _
    $region35: #{tpu_custom_call.1} parent=1 // pred_check_branch
      %75 = sbr.rel (0) target = $region37
    $region36: #{tpu_custom_call.1} parent=1 // pred_region
      %76 = dma.done [#allocation6], 512
    $region37: #{tpu_custom_call.1} parent=1 // pred_fallthru
      _
    // Predicated region
    $region38: #{tpu_custom_call.1} parent=1 // pred_check
      _
    $region39: #{tpu_custom_call.1} parent=1 // pred_check_branch
      %78 = sbr.rel (0) target = $region41
    $region40: #{tpu_custom_call.1} parent=1 // pred_region
      %79 = dma.done [#allocation9], 512
    $region41: #{tpu_custom_call.1} parent=1 // pred_fallthru
      _
    %v80 = vld [vmem:[#allocation2] sm:$0x3]
    %v81 = vld [vmem:[#allocation5] sm:$0xff]
    %v82 = vld [vmem:[#allocation5 + $0x8] sm:$0xff]
    %v83 = vld [vmem:[#allocation7] sm:$0xff]
    %v84 = vld [vmem:[#allocation7 + $0x8] sm:$0xff]
    %v85 = vld [vmem:[#allocation7 + $0x10] sm:$0xff]
    %v86 = vld [vmem:[#allocation7 + $0x18] sm:$0xff]
    %v87 = vld [vmem:[#allocation8] sm:$0xff]
    %v88 = vld [vmem:[#allocation8 + $0x8] sm:$0xff]
    %v89 = vld [vmem:[#allocation8 + $0x10] sm:$0xff]
    %v90 = vld [vmem:[#allocation8 + $0x18] sm:$0xff]
    %vm91 = vcmask 261120
    %v93 = vsel %vm91, %v81, 0
    %v96 = vsel %vm91, %v82, 0
    %98 = vmatprep.subr.mxu0 0.0
    %99 = vmatpush1.msra.mxu0 %v87
    %100 = vmatprep.subr.mxu0 0.0
    %101 = vmatpush1.msra.mxu0 %v88
    %102 = vmatprep.subr.mxu0 0.0
    %103 = vmatpush1.msra.mxu0 %v89
    %104 = vmatprep.subr.mxu0 0.0
    %105 = vmatpush1.msra.mxu0 %v90
    %106 = vmatprep.subr.mxu0 0.0
    %107 = vmatpush1.msra.mxu0 0.0
    %108 = vmatprep.subr.mxu0 0.0
    %109 = vmatpush1.msra.mxu0 0.0
    %110 = vmatprep.subr.mxu0 0.0
    %111 = vmatpush1.msra.mxu0 0.0
    %112 = vmatprep.subr.mxu0 0.0
    %113 = vmatpush1.msra.mxu0 0.0
    %114 = vmatprep.subr.mxu0 0.0
    %115 = vmatpush1.msra.mxu0 0.0
    %116 = vmatprep.subr.mxu0 0.0
    %117 = vmatpush1.msra.mxu0 0.0
    %118 = vmatprep.subr.mxu0 0.0
    %119 = vmatpush1.msra.mxu0 0.0
    %120 = vmatprep.subr.mxu0 0.0
    %121 = vmatpush1.msra.mxu0 0.0
    %122 = vmatprep.subr.mxu0 0.0
    %123 = vmatpush1.msra.mxu0 0.0
    %124 = vmatprep.subr.mxu0 0.0
    %125 = vmatpush1.msra.mxu0 0.0
    %126 = vmatprep.subr.mxu0 0.0
    %127 = vmatpush1.msra.mxu0 0.0
    %128 = vmatprep.subr.mxu0 0.0
    %129 = vmatpush1.msra.mxu0 0.0
    %130 = vmatprep.subr.mxu0 0.0
    %131 = vmatpush1.msra.mxu0 0.0
    %132 = vmatprep.subr.mxu0 0.0
    %133 = vmatpush1.msra.mxu0 0.0
    %134 = vmatprep.subr.mxu0 0.0
    %135 = vmatpush1.msra.mxu0 0.0
    %136 = vmatprep.subr.mxu0 0.0
    %137 = vmatpush1.msra.mxu0 0.0
    %138 = vmatprep.subr.mxu0 0.0
    %139 = vmatpush1.msra.mxu0 0.0
    %140 = vmatprep.subr.mxu0 0.0
    %141 = vmatpush1.msra.mxu0 0.0
    %142 = vmatprep.subr.mxu0 0.0
    %143 = vmatpush1.msra.mxu0 0.0
    %144 = vmatprep.subr.mxu0 0.0
    %145 = vmatpush1.msra.mxu0 0.0
    %146 = vmatprep.subr.mxu0 0.0
    %147 = vmatpush1.msra.mxu0 0.0
    %148 = vmatprep.subr.mxu0 0.0
    %149 = vmatpush1.msra.mxu0 0.0
    %150 = vmatprep.subr.mxu0 0.0
    %151 = vmatpush1.msra.mxu0 0.0
    %152 = vmatprep.subr.mxu0 0.0
    %153 = vmatpush1.msra.mxu0 0.0
    %154 = vmatprep.subr.mxu0 0.0
    %155 = vmatpush1.msra.mxu0 0.0
    %156 = vmatprep.subr.mxu0 0.0
    %157 = vmatpush1.msra.mxu0 0.0
    %158 = vmatprep.subr.mxu0 0.0
    %159 = vmatpush1.msra.mxu0 0.0
    %160 = vmatprep.subr.mxu0 0.0
    %161 = vmatpush1.msra.mxu0 0.0
    %162 = vmatprep.mubr.f32.mxu0 0.0
    %163 = vmatmul.mubr.f32.gmra.mrb[0].mxu0 %v93
    %v164 = vpop.f32.mrb[0].mxu0
    %v165 = vadd.f32 0.0, %v164
    %v166 = vpop.f32.mrb[0].mxu0
    %167 = vmatprep.mubr.f32.mxu0 0.0
    %168 = vmatmul.mubr.f32.gmra.mrb[0].mxu0 %v96
    %v169 = vpop.f32.mrb[0].mxu0
    %v170 = vadd.f32 0.0, %v169
    %v171 = vpop.f32.mrb[0].mxu0
    %172 = vdwg.mxu0
    %v173 = vld [vmem:[%s4] sm:$0x1]
    %v175 = vlaneseq
    %v176 = vshrl.u32 %v175, 7
    %v177 = vsub.s32 0, %v176
    %v178 = vrot.slane %v173, %v177
    %v181 = vsel %vm91, %v80, 0
    %183 = vmatprep.subr.mxu0 0.0
    %184 = vmatpush1.msra.mxu0 %v83
    %185 = vmatprep.subr.mxu0 0.0
    %186 = vmatpush1.msra.mxu0 %v84
    %187 = vmatprep.subr.mxu0 0.0
    %188 = vmatpush1.msra.mxu0 %v85
    %189 = vmatprep.subr.mxu0 0.0
    %190 = vmatpush1.msra.mxu0 %v86
    %191 = vmatprep.subr.mxu0 0.0
    %192 = vmatpush1.msra.mxu0 0.0
    %193 = vmatprep.subr.mxu0 0.0
    %194 = vmatpush1.msra.mxu0 0.0
    %195 = vmatprep.subr.mxu0 0.0
    %196 = vmatpush1.msra.mxu0 0.0
    %197 = vmatprep.subr.mxu0 0.0
    %198 = vmatpush1.msra.mxu0 0.0
    %199 = vmatprep.subr.mxu0 0.0
    %200 = vmatpush1.msra.mxu0 0.0
    %201 = vmatprep.subr.mxu0 0.0
    %202 = vmatpush1.msra.mxu0 0.0
    %203 = vmatprep.subr.mxu0 0.0
    %204 = vmatpush1.msra.mxu0 0.0
    %205 = vmatprep.subr.mxu0 0.0
    %206 = vmatpush1.msra.mxu0 0.0
    %207 = vmatprep.subr.mxu0 0.0
    %208 = vmatpush1.msra.mxu0 0.0
    %209 = vmatprep.subr.mxu0 0.0
    %210 = vmatpush1.msra.mxu0 0.0
    %211 = vmatprep.subr.mxu0 0.0
    %212 = vmatpush1.msra.mxu0 0.0
    %213 = vmatprep.subr.mxu0 0.0
    %214 = vmatpush1.msra.mxu0 0.0
    %215 = vmatprep.subr.mxu0 0.0
    %216 = vmatpush1.msra.mxu0 0.0
    %217 = vmatprep.subr.mxu0 0.0
    %218 = vmatpush1.msra.mxu0 0.0
    %219 = vmatprep.subr.mxu0 0.0
    %220 = vmatpush1.msra.mxu0 0.0
    %221 = vmatprep.subr.mxu0 0.0
    %222 = vmatpush1.msra.mxu0 0.0
    %223 = vmatprep.subr.mxu0 0.0
    %224 = vmatpush1.msra.mxu0 0.0
    %225 = vmatprep.subr.mxu0 0.0
    %226 = vmatpush1.msra.mxu0 0.0
    %227 = vmatprep.subr.mxu0 0.0
    %228 = vmatpush1.msra.mxu0 0.0
    %229 = vmatprep.subr.mxu0 0.0
    %230 = vmatpush1.msra.mxu0 0.0
    %231 = vmatprep.subr.mxu0 0.0
    %232 = vmatpush1.msra.mxu0 0.0
    %233 = vmatprep.subr.mxu0 0.0
    %234 = vmatpush1.msra.mxu0 0.0
    %235 = vmatprep.subr.mxu0 0.0
    %236 = vmatpush1.msra.mxu0 0.0
    %237 = vmatprep.subr.mxu0 0.0
    %238 = vmatpush1.msra.mxu0 0.0
    %239 = vmatprep.subr.mxu0 0.0
    %240 = vmatpush1.msra.mxu0 0.0
    %241 = vmatprep.subr.mxu0 0.0
    %242 = vmatpush1.msra.mxu0 0.0
    %243 = vmatprep.subr.mxu0 0.0
    %244 = vmatpush1.msra.mxu0 0.0
    %245 = vmatprep.subr.mxu0 0.0
    %246 = vmatpush1.msra.mxu0 0.0
    %247 = vmatprep.mubr.f32.mxu0 0.0
    %248 = vmatmul.mubr.f32.gmra.mrb[0].mxu0 %v181
    %v249 = vpop.f32.mrb[0].mxu0
    %v250 = vadd.f32 %v178, %v249
    %v251 = vpop.f32.mrb[0].mxu0
    %252 = vdwg.mxu0
    %v255 = vunpack.c.l.s4 1966171168
    %v256 = vunpack.c.0.s8 %v255
    %v257 = vlaneseq
    %v258 = vshrl.u32 %v257, 7
    %v259 = vsub.s32 %v256, %v258
    %v260 = vrot.slane %v250, %v259
    %v261 = vcombine.high %v260, %v260
    %v263 = vunpack.c.l.s4 1966171168
    %v264 = vunpack.c.0.s8 %v263
    %v265 = vlaneseq
    %v266 = vshrl.u32 %v265, 7
    %v267 = vsub.s32 %v264, %v266
    %v268 = vrot.slane %v260, %v267
    %v270 = vunpack.c.l.s4 1966171168
    %v271 = vunpack.c.0.s8 %v270
    %v272 = vlaneseq
    %v273 = vshrl.u32 %v272, 7
    %v274 = vsub.s32 %v271, %v273
    %v275 = vrot.slane %v261, %v274
    %v276 = vlaneseq
    %v277 = vshrl.u32 %v276, 7
    %v278 = vsub.s32 0, %v277
    %v279 = vrot.slane %v268, %v278
    %v280 = vlaneseq
    %v281 = vshrl.u32 %v280, 7
    %v282 = vsub.s32 0, %v281
    %v283 = vrot.slane %v275, %v282
    %v286 = vadd.f32 %v165, %v279
    %v287 = vadd.f32 %v170, %v283
    %v288 = vmax.f32 %v286, 0.0
    %v289 = vmax.f32 %v287, 0.0
    %v290 = vld [vmem:[%s5] sm:$0x1]
    %v292 = vlaneseq
    %v293 = vshrl.u32 %v292, 7
    %v294 = vsub.s32 0, %v293
    %v295 = vrot.slane %v290, %v294
    %v297 = vmul.f32 %v288, %v295
    %v298 = vmul.f32 %v289, %v295
    %v299 = vsel %vm91, %v297, 0.0
    %300 = vadd.xlane.f32.xlu0 %v299
    %v301 = vpop.xlane.xlu0 %300
    %v302 = vsel %vm91, %v298, 0.0
    %303 = vadd.xlane.f32.xlu0 %v302
    %v304 = vpop.xlane.xlu0 %303
    %v307 = vlaneseq
    %v308 = vand.u32 %v307, 127
    %v309 = vlaneseq
    %v310 = vshrl.u32 %v309, 7
    %v311 = vsub.s32 %v308, %v310
    %v312 = vrot.slane %v301, %v311
    %v313 = vlaneseq
    %v314 = vshrl.u32 %v313, 7
    %v315 = vsub.s32 %v308, %v314
    %v316 = vrot.slane %v304, %v315
    %vm317 = vcmask 1041409
    %v318 = vsel %vm317, %v316, %v312
    %vm320 = vcmask 58368
    %v321 = vsel %vm320, %v318, -inf
    %322 = vmax.xlane.f32.xlu0 %v321
    %v323 = vpop.xlane.xlu0 %322
    %v325 = vlaneseq
    %v326 = vshrl.u32 %v325, 7
    %v327 = vsub.s32 0, %v326
    %v328 = vrot.slane %v323, %v327
    %v329 = vlaneseq
    %v330 = vshrl.u32 %v329, 7
    %v331 = vsub.s32 1, %v330
    %v332 = vrot.slane %v323, %v331
    %v335 = vsub.f32 %v301, %v328
    %v336 = vsub.f32 %v304, %v332
    %v337 = vmul.f32 %v335, 1.442695
    %v338 = vpow.pop %v337
    %v339 = vmul.f32 %v336, 1.442695
    %v340 = vpow.pop %v339
    %343 = vset.pattern.permute.xlu0 0
    %344 = vperm.xlu0 %343, %v338
    %v345 = vpop.permute.xlu0 %344
    %346 = vset.pattern.permute.xlu0 0
    %347 = vperm.xlu0 %346, %v340
    %v348 = vpop.permute.xlu0 %347
    %v349 = vlaneseq
    %v350 = vshrl.u32 %v349, 7
    %v351 = vsub.s32 %v308, %v350
    %v352 = vrot.slane %v345, %v351
    %v353 = vlaneseq
    %v354 = vshrl.u32 %v353, 7
    %v355 = vsub.s32 %v308, %v354
    %v356 = vrot.slane %v348, %v355
    %v357 = vsel %vm317, %v356, %v352
    %v359 = vsel %vm320, %v357, 0.0
    %360 = vadd.xlane.f32.xlu0 %v359
    %v361 = vpop.xlane.xlu0 %360
    %v362 = vrcp.pop %v361
    %v363 = vmul.f32 %v361, %v362
    %v364 = vsub.f32 2.0, %v363
    %v365 = vmul.f32 %v362, %v364
    %v367 = vlaneseq
    %v368 = vshrl.u32 %v367, 7
    %v369 = vsub.s32 0, %v368
    %v370 = vrot.slane %v365, %v369
    %v371 = vlaneseq
    %v372 = vshrl.u32 %v371, 7
    %v373 = vsub.s32 1, %v372
    %v374 = vrot.slane %v365, %v373
    %v377 = vmul.f32 %v338, %v370
    %v378 = vmul.f32 %v340, %v374
    %380 = vset.pattern.permute.xlu0 0
    %381 = vperm.xlu0 %380, %v377
    %v382 = vpop.permute.xlu0 %381
    %385 = vset.pattern.permute.xlu0 0
    %386 = vperm.xlu0 %385, %v378
    %v387 = vpop.permute.xlu0 %386
    %v389 = vmul.f32 %v382, %v81
    %v390 = vmul.f32 %v387, %v82
    %v391 = vsel %vm91, %v389, 0.0
    %v392 = vrot.slane %v391, 4
    %v393 = vadd.f32 %v391, %v392
    %v394 = vrot.slane %v393, 2
    %v395 = vadd.f32 %v393, %v394
    %v396 = vrot.slane %v395, 1
    %v397 = vadd.f32 %v395, %v396
    %v398 = vsel %vm91, %v390, 0.0
    %v399 = vrot.slane %v398, 4
    %v400 = vadd.f32 %v398, %v399
    %v401 = vrot.slane %v400, 2
    %v402 = vadd.f32 %v400, %v401
    %v403 = vrot.slane %v402, 1
    %v404 = vadd.f32 %v402, %v403
    %v407 = vsel %vm317, %v404, %v397
    %v409 = vsel %vm91, %v407, 0.0
    %v410 = vlaneseq
    %v411 = vshrl.u32 %v410, 7
    %v412 = vsub.s32 %v308, %v411
    %v413 = vrot.slane %v382, %v412
    %v414 = vlaneseq
    %v415 = vshrl.u32 %v414, 7
    %v416 = vsub.s32 %v308, %v415
    %v417 = vrot.slane %v387, %v416
    %v418 = vsel %vm317, %v417, %v413
    %vm420 = vcmask 64512
    %v421 = vsel %vm420, %v418, 0.0
    %422 = vst [vmem:[#allocation10] sm:$0x3] %v409
    %423 = vst [vmem:[#allocation11] sm:$0x3] %v421
    // Predicated region
    $region42: #{tpu_custom_call.1} parent=1 // pred_check
      _
    $region43: #{tpu_custom_call.1} parent=1 // pred_check_branch
      %425 = sbr.rel (0) target = $region45
    $region44: #{tpu_custom_call.1} parent=1 // pred_region
      %s427 = ssub.s32 32, 32
      %428 = vsyncadd [#allocation4], %s427
      %s430 = sshll.u32 [#allocation10], 4
      %s431 = int_to_ptr.vmem [resolvable:$true] %s430
      %433 = dma.vmem_to_hbm [thread:$0]  %s431, 32, %s6, [#allocation4]
    $region45: #{tpu_custom_call.1} parent=1 // pred_fallthru
      _
    // Predicated region
    $region46: #{tpu_custom_call.1} parent=1 // pred_check
      _
    $region47: #{tpu_custom_call.1} parent=1 // pred_check_branch
      %435 = sbr.rel (0) target = $region49
    $region48: #{tpu_custom_call.1} parent=1 // pred_region
      %s437 = ssub.s32 32, 32
      %438 = vsyncadd [#allocation12], %s437
      %s440 = sshll.u32 [#allocation11], 4
      %s441 = int_to_ptr.vmem [resolvable:$true] %s440
      %443 = dma.vmem_to_hbm [thread:$0]  %s441, 32, %s7, [#allocation12]
    $region49: #{tpu_custom_call.1} parent=1 // pred_fallthru
      _
    // Predicated region
    $region50: #{tpu_custom_call.1} parent=1 // pred_check
      _
    $region51: #{tpu_custom_call.1} parent=1 // pred_check_branch
      %445 = sbr.rel (0) target = $region53
    $region52: #{tpu_custom_call.1} parent=1 // pred_region
      %446 = dma.done [#allocation4], 32
    $region53: #{tpu_custom_call.1} parent=1 // pred_fallthru
      _
    // Predicated region
    $region54: #{tpu_custom_call.1} parent=1 // pred_check
      _
    $region55: #{tpu_custom_call.1} parent=1 // pred_check_branch
      %448 = sbr.rel (0) target = $region57
    $region56: #{tpu_custom_call.1} parent=1 // pred_region
      %449 = dma.done [#allocation12], 32
    $region57: #{tpu_custom_call.1} parent=1 // pred_fallthru
      _
    %450 = vsyncpa [#allocation3], 1
    %451 = vsyncpa [#allocation6], 1
    %452 = vsyncpa [#allocation9], 1
    %453 = vsyncpa [#allocation4], 1
    %454 = vsyncpa [#allocation12], 1

// kernel: tpu_custom_call.1
$region0: #{tpu_custom_call.1}
  #allocation0 [shape = 'u32[]', space=smem, size = 0x4, offset = 0x4, fixed_abs, tag = 'smem constant byte address 0x4 - core index']
  #allocation1 [shape = 'u32[144,128]{1,0:T(1,128)}', space=vmem, size = 0x12000, scoped, tag = 'internal scratch']
  %s0 = inlined_call_operand.hbm [shape: f32[2,32], index: 0, kind: input, shape index: {}]
  %s1 = inlined_call_operand.hbm [shape: f32[2,8,32], index: 1, kind: input, shape index: {}]
  %s2 = inlined_call_operand.hbm [shape: f32[32,32], index: 2, kind: input, shape index: {}]
  %s3 = inlined_call_operand.hbm [shape: f32[32,32], index: 3, kind: input, shape index: {}]
  %s4 = inlined_call_operand.vmem [shape: f32[1,32], index: 4, kind: input, shape index: {}]
  %s5 = inlined_call_operand.vmem [shape: f32[1,32], index: 5, kind: input, shape index: {}]
  %s6 = inlined_call_operand.hbm [shape: f32[2,128], index: 6, kind: output, shape index: {0}]
  %s7 = inlined_call_operand.hbm [shape: f32[2,128], index: 7, kind: output, shape index: {1}]
  %8 = xla_tuple %s6, %s7
  %s9 = sld [smem:[#allocation0]]
  $region58: #{tpu_custom_call.1} parent=0
    _
  %s11 = ssub.s32 1, %s9
  %s12 = scalar_select 0, %s11, %s9
  $region1: #{tpu_custom_call.1} parent=0
    #allocation2 [shape = 'u8[1024]{0}', space=vmem, size = 0x400, scoped, tag = 'input window, operand 0, single buffered']
    #allocation3 [shape = 's32[1]{0}', space=sflag, size = 0x4, scoped, tag = 'scoped memory for tpu_custom_call.1']
    #allocation4 [shape = 's32[1]{0}', space=sflag, size = 0x4, scoped, tag = 'scoped memory for tpu_custom_call.1']
    #allocation5 [shape = 'u8[8192]{0}', space=vmem, size = 0x2000, scoped, tag = 'input window, operand 1, single buffered']
    #allocation6 [shape = 's32[1]{0}', space=sflag, size = 0x4, scoped, tag = 'scoped memory for tpu_custom_call.1']
    #allocation7 [shape = 'u8[16384]{0}', space=vmem, size = 0x4000, scoped, tag = 'input window, operand 2, single buffered']
    #allocation8 [shape = 'u8[16384]{0}', space=vmem, size = 0x4000, scoped, tag = 'input window, operand 3, single buffered']
    #allocation9 [shape = 's32[1]{0}', space=sflag, size = 0x4, scoped, tag = 'scoped memory for tpu_custom_call.1']
    #allocation10 [shape = 'u8[1024]{0}', space=vmem, size = 0x400, scoped, tag = 'output window, operand 0, single buffered']
    #allocation11 [shape = 'u8[1024]{0}', space=vmem, size = 0x400, scoped, tag = 'output window, operand 1, single buffered']
    #allocation12 [shape = 's32[1]{0}', space=sflag, size = 0x4, scoped, tag = 'scoped memory for tpu_custom_call.1']
    %13 = vsyncpa [#allocation3], 0
    %14 = vsyncpa [#allocation6], 0
    %15 = vsyncpa [#allocation9], 0
    %16 = vsyncpa [#allocation4], 0
    %17 = vsyncpa [#allocation12], 0
    // Predicated region
    $region2: #{tpu_custom_call.1} parent=1 // pred_check
      _
    $region3: #{tpu_custom_call.1} parent=1 // pred_check_branch
      %19 = sbr.rel (0) target = $region5
    $region4: #{tpu_custom_call.1} parent=1 // pred_region
      %s21 = ssub.s32 32, 32
      %22 = vsyncadd [#allocation3], %s21
      %s24 = sshll.u32 [#allocation2], 4
      %s25 = int_to_ptr.vmem [resolvable:$true] %s24
      %27 = dma.hbm_to_vmem [thread:$0]  %s0, 32, %s25, [#allocation3]
    $region5: #{tpu_custom_call.1} parent=1 // pred_fallthru
      _
    // Predicated region
    $region6: #{tpu_custom_call.1} parent=1 // pred_check
      _
    $region7: #{tpu_custom_call.1} parent=1 // pred_check_branch
      %29 = sbr.rel (0) target = $region9
    $region8: #{tpu_custom_call.1} parent=1 // pred_region
      %s31 = ssub.s32 256, 256
      %32 = vsyncadd [#allocation6], %s31
      %s33 = sshll.u32 [#allocation5], 4
      %s34 = int_to_ptr.vmem [resolvable:$true] %s33
      %39 = dma.hbm_to_vmem [thread:$0]  %s1, 256, %s34, [#allocation6], 128, 128, 8
    $region9: #{tpu_custom_call.1} parent=1 // pred_fallthru
      _
    // Predicated region
    $region10: #{tpu_custom_call.1} parent=1 // pred_check
      _
    $region11: #{tpu_custom_call.1} parent=1 // pred_check_branch
      %41 = sbr.rel (0) target = $region13
    $region12: #{tpu_custom_call.1} parent=1 // pred_region
      %s43 = ssub.s32 512, 512
      %44 = vsyncadd [#allocation6], %s43
      %s45 = sshll.u32 [#allocation7], 4
      %s46 = int_to_ptr.vmem [resolvable:$true] %s45
      %51 = dma.hbm_to_vmem [thread:$0]  %s2, 512, %s46, [#allocation6], 128, 128, 8
    $region13: #{tpu_custom_call.1} parent=1 // pred_fallthru
      _
    // Predicated region
    $region14: #{tpu_custom_call.1} parent=1 // pred_check
      _
    $region15: #{tpu_custom_call.1} parent=1 // pred_check_branch
      %53 = sbr.rel (0) target = $region17
    $region16: #{tpu_custom_call.1} parent=1 // pred_region
      %s55 = ssub.s32 512, 512
      %56 = vsyncadd [#allocation9], %s55
      %s57 = sshll.u32 [#allocation8], 4
      %s58 = int_to_ptr.vmem [resolvable:$true] %s57
      %63 = dma.hbm_to_vmem [thread:$0]  %s3, 512, %s58, [#allocation9], 128, 128, 8
    $region17: #{tpu_custom_call.1} parent=1 // pred_fallthru
      _
    // Predicated region
    $region18: #{tpu_custom_call.1} parent=1 // pred_check
      _
    $region19: #{tpu_custom_call.1} parent=1 // pred_check_branch
      %65 = sbr.rel (0) target = $region21
    $region20: #{tpu_custom_call.1} parent=1 // pred_region
      _
    $region21: #{tpu_custom_call.1} parent=1 // pred_fallthru
      _
    // Predicated region
    $region22: #{tpu_custom_call.1} parent=1 // pred_check
      _
    $region23: #{tpu_custom_call.1} parent=1 // pred_check_branch
      %67 = sbr.rel (0) target = $region25
    $region24: #{tpu_custom_call.1} parent=1 // pred_region
      _
    $region25: #{tpu_custom_call.1} parent=1 // pred_fallthru
      _
    // Predicated region
    $region26: #{tpu_custom_call.1} parent=1 // pred_check
      _
    $region27: #{tpu_custom_call.1} parent=1 // pred_check_branch
      %69 = sbr.rel (0) target = $region29
    $region28: #{tpu_custom_call.1} parent=1 // pred_region
      %70 = dma.done [#allocation3], 32
    $region29: #{tpu_custom_call.1} parent=1 // pred_fallthru
      _
    // Predicated region
    $region30: #{tpu_custom_call.1} parent=1 // pred_check
      _
    $region31: #{tpu_custom_call.1} parent=1 // pred_check_branch
      %72 = sbr.rel (0) target = $region33
    $region32: #{tpu_custom_call.1} parent=1 // pred_region
      %73 = dma.done [#allocation6], 256
    $region33: #{tpu_custom_call.1} parent=1 // pred_fallthru
      _
    // Predicated region
    $region34: #{tpu_custom_call.1} parent=1 // pred_check
      _
    $region35: #{tpu_custom_call.1} parent=1 // pred_check_branch
      %75 = sbr.rel (0) target = $region37
    $region36: #{tpu_custom_call.1} parent=1 // pred_region
      %76 = dma.done [#allocation6], 512
    $region37: #{tpu_custom_call.1} parent=1 // pred_fallthru
      _
    // Predicated region
    $region38: #{tpu_custom_call.1} parent=1 // pred_check
      _
    $region39: #{tpu_custom_call.1} parent=1 // pred_check_branch
      %78 = sbr.rel (0) target = $region41
    $region40: #{tpu_custom_call.1} parent=1 // pred_region
      %79 = dma.done [#allocation9], 512
    $region41: #{tpu_custom_call.1} parent=1 // pred_fallthru
      _
    %v80 = vld [vmem:[#allocation2] sm:$0x3]
    %v81 = vld [vmem:[#allocation5] sm:$0xff]
    %v82 = vld [vmem:[#allocation5 + $0x8] sm:$0xff]
    %v83 = vld [vmem:[#allocation7] sm:$0xff]
    %v84 = vld [vmem:[#allocation7 + $0x8] sm:$0xff]
    %v85 = vld [vmem:[#allocation7 + $0x10] sm:$0xff]
    %v86 = vld [vmem:[#allocation7 + $0x18] sm:$0xff]
    %v87 = vld [vmem:[#allocation8] sm:$0xff]
    %v88 = vld [vmem:[#allocation8 + $0x8] sm:$0xff]
    %v89 = vld [vmem:[#allocation8 + $0x10] sm:$0xff]
    %v90 = vld [vmem:[#allocation8 + $0x18] sm:$0xff]
    %vm91 = vcmask 261120
    %v93 = vsel %vm91, %v81, 0
    %v96 = vsel %vm91, %v82, 0
    %98 = vmatprep.subr.mxu0 0.0
    %99 = vmatpush1.msra.mxu0 %v87
    %100 = vmatprep.subr.mxu0 0.0
    %101 = vmatpush1.msra.mxu0 %v88
    %102 = vmatprep.subr.mxu0 0.0
    %103 = vmatpush1.msra.mxu0 %v89
    %104 = vmatprep.subr.mxu0 0.0
    %105 = vmatpush1.msra.mxu0 %v90
    %106 = vmatprep.subr.mxu0 0.0
    %107 = vmatpush1.msra.mxu0 0.0
    %108 = vmatprep.subr.mxu0 0.0
    %109 = vmatpush1.msra.mxu0 0.0
    %110 = vmatprep.subr.mxu0 0.0
    %111 = vmatpush1.msra.mxu0 0.0
    %112 = vmatprep.subr.mxu0 0.0
    %113 = vmatpush1.msra.mxu0 0.0
    %114 = vmatprep.subr.mxu0 0.0
    %115 = vmatpush1.msra.mxu0 0.0
    %116 = vmatprep.subr.mxu0 0.0
    %117 = vmatpush1.msra.mxu0 0.0
    %118 = vmatprep.subr.mxu0 0.0
    %119 = vmatpush1.msra.mxu0 0.0
    %120 = vmatprep.subr.mxu0 0.0
    %121 = vmatpush1.msra.mxu0 0.0
    %122 = vmatprep.subr.mxu0 0.0
    %123 = vmatpush1.msra.mxu0 0.0
    %124 = vmatprep.subr.mxu0 0.0
    %125 = vmatpush1.msra.mxu0 0.0
    %126 = vmatprep.subr.mxu0 0.0
    %127 = vmatpush1.msra.mxu0 0.0
    %128 = vmatprep.subr.mxu0 0.0
    %129 = vmatpush1.msra.mxu0 0.0
    %130 = vmatprep.subr.mxu0 0.0
    %131 = vmatpush1.msra.mxu0 0.0
    %132 = vmatprep.subr.mxu0 0.0
    %133 = vmatpush1.msra.mxu0 0.0
    %134 = vmatprep.subr.mxu0 0.0
    %135 = vmatpush1.msra.mxu0 0.0
    %136 = vmatprep.subr.mxu0 0.0
    %137 = vmatpush1.msra.mxu0 0.0
    %138 = vmatprep.subr.mxu0 0.0
    %139 = vmatpush1.msra.mxu0 0.0
    %140 = vmatprep.subr.mxu0 0.0
    %141 = vmatpush1.msra.mxu0 0.0
    %142 = vmatprep.subr.mxu0 0.0
    %143 = vmatpush1.msra.mxu0 0.0
    %144 = vmatprep.subr.mxu0 0.0
    %145 = vmatpush1.msra.mxu0 0.0
    %146 = vmatprep.subr.mxu0 0.0
    %147 = vmatpush1.msra.mxu0 0.0
    %148 = vmatprep.subr.mxu0 0.0
    %149 = vmatpush1.msra.mxu0 0.0
    %150 = vmatprep.subr.mxu0 0.0
    %151 = vmatpush1.msra.mxu0 0.0
    %152 = vmatprep.subr.mxu0 0.0
    %153 = vmatpush1.msra.mxu0 0.0
    %154 = vmatprep.subr.mxu0 0.0
    %155 = vmatpush1.msra.mxu0 0.0
    %156 = vmatprep.subr.mxu0 0.0
    %157 = vmatpush1.msra.mxu0 0.0
    %158 = vmatprep.subr.mxu0 0.0
    %159 = vmatpush1.msra.mxu0 0.0
    %160 = vmatprep.subr.mxu0 0.0
    %161 = vmatpush1.msra.mxu0 0.0
    %162 = vmatprep.mubr.f32.mxu0 0.0
    %163 = vmatmul.mubr.f32.gmra.mrb[0].mxu0 %v93
    %v164 = vpop.f32.mrb[0].mxu0
    %v165 = vadd.f32 0.0, %v164
    %v166 = vpop.f32.mrb[0].mxu0
    %167 = vmatprep.mubr.f32.mxu0 0.0
    %168 = vmatmul.mubr.f32.gmra.mrb[0].mxu0 %v96
    %v169 = vpop.f32.mrb[0].mxu0
    %v170 = vadd.f32 0.0, %v169
    %v171 = vpop.f32.mrb[0].mxu0
    %172 = vdwg.mxu0
    %v173 = vld [vmem:[%s4] sm:$0x1]
    %v175 = vlaneseq
    %v176 = vshrl.u32 %v175, 7
    %v177 = vsub.s32 0, %v176
    %v178 = vrot.slane %v173, %v177
    %v181 = vsel %vm91, %v80, 0
    %183 = vmatprep.subr.mxu0 0.0
    %184 = vmatpush1.msra.mxu0 %v83
    %185 = vmatprep.subr.mxu0 0.0
    %186 = vmatpush1.msra.mxu0 %v84
    %187 = vmatprep.subr.mxu0 0.0
    %188 = vmatpush1.msra.mxu0 %v85
    %189 = vmatprep.subr.mxu0 0.0
    %190 = vmatpush1.msra.mxu0 %v86
    %191 = vmatprep.subr.mxu0 0.0
    %192 = vmatpush1.msra.mxu0 0.0
    %193 = vmatprep.subr.mxu0 0.0
    %194 = vmatpush1.msra.mxu0 0.0
    %195 = vmatprep.subr.mxu0 0.0
    %196 = vmatpush1.msra.mxu0 0.0
    %197 = vmatprep.subr.mxu0 0.0
    %198 = vmatpush1.msra.mxu0 0.0
    %199 = vmatprep.subr.mxu0 0.0
    %200 = vmatpush1.msra.mxu0 0.0
    %201 = vmatprep.subr.mxu0 0.0
    %202 = vmatpush1.msra.mxu0 0.0
    %203 = vmatprep.subr.mxu0 0.0
    %204 = vmatpush1.msra.mxu0 0.0
    %205 = vmatprep.subr.mxu0 0.0
    %206 = vmatpush1.msra.mxu0 0.0
    %207 = vmatprep.subr.mxu0 0.0
    %208 = vmatpush1.msra.mxu0 0.0
    %209 = vmatprep.subr.mxu0 0.0
    %210 = vmatpush1.msra.mxu0 0.0
    %211 = vmatprep.subr.mxu0 0.0
    %212 = vmatpush1.msra.mxu0 0.0
    %213 = vmatprep.subr.mxu0 0.0
    %214 = vmatpush1.msra.mxu0 0.0
    %215 = vmatprep.subr.mxu0 0.0
    %216 = vmatpush1.msra.mxu0 0.0
    %217 = vmatprep.subr.mxu0 0.0
    %218 = vmatpush1.msra.mxu0 0.0
    %219 = vmatprep.subr.mxu0 0.0
    %220 = vmatpush1.msra.mxu0 0.0
    %221 = vmatprep.subr.mxu0 0.0
    %222 = vmatpush1.msra.mxu0 0.0
    %223 = vmatprep.subr.mxu0 0.0
    %224 = vmatpush1.msra.mxu0 0.0
    %225 = vmatprep.subr.mxu0 0.0
    %226 = vmatpush1.msra.mxu0 0.0
    %227 = vmatprep.subr.mxu0 0.0
    %228 = vmatpush1.msra.mxu0 0.0
    %229 = vmatprep.subr.mxu0 0.0
    %230 = vmatpush1.msra.mxu0 0.0
    %231 = vmatprep.subr.mxu0 0.0
    %232 = vmatpush1.msra.mxu0 0.0
    %233 = vmatprep.subr.mxu0 0.0
    %234 = vmatpush1.msra.mxu0 0.0
    %235 = vmatprep.subr.mxu0 0.0
    %236 = vmatpush1.msra.mxu0 0.0
    %237 = vmatprep.subr.mxu0 0.0
    %238 = vmatpush1.msra.mxu0 0.0
    %239 = vmatprep.subr.mxu0 0.0
    %240 = vmatpush1.msra.mxu0 0.0
    %241 = vmatprep.subr.mxu0 0.0
    %242 = vmatpush1.msra.mxu0 0.0
    %243 = vmatprep.subr.mxu0 0.0
    %244 = vmatpush1.msra.mxu0 0.0
    %245 = vmatprep.subr.mxu0 0.0
    %246 = vmatpush1.msra.mxu0 0.0
    %247 = vmatprep.mubr.f32.mxu0 0.0
    %248 = vmatmul.mubr.f32.gmra.mrb[0].mxu0 %v181
    %v249 = vpop.f32.mrb[0].mxu0
    %v250 = vadd.f32 %v178, %v249
    %v251 = vpop.f32.mrb[0].mxu0
    %252 = vdwg.mxu0
    %v255 = vunpack.c.l.s4 1966171168
    %v256 = vunpack.c.0.s8 %v255
    %v257 = vlaneseq
    %v258 = vshrl.u32 %v257, 7
    %v259 = vsub.s32 %v256, %v258
    %v260 = vrot.slane %v250, %v259
    %v261 = vcombine.high %v260, %v260
    %v263 = vunpack.c.l.s4 1966171168
    %v264 = vunpack.c.0.s8 %v263
    %v265 = vlaneseq
    %v266 = vshrl.u32 %v265, 7
    %v267 = vsub.s32 %v264, %v266
    %v268 = vrot.slane %v260, %v267
    %v270 = vunpack.c.l.s4 1966171168
    %v271 = vunpack.c.0.s8 %v270
    %v272 = vlaneseq
    %v273 = vshrl.u32 %v272, 7
    %v274 = vsub.s32 %v271, %v273
    %v275 = vrot.slane %v261, %v274
    %v276 = vlaneseq
    %v277 = vshrl.u32 %v276, 7
    %v278 = vsub.s32 0, %v277
    %v279 = vrot.slane %v268, %v278
    %v280 = vlaneseq
    %v281 = vshrl.u32 %v280, 7
    %v282 = vsub.s32 0, %v281
    %v283 = vrot.slane %v275, %v282
    %v286 = vadd.f32 %v165, %v279
    %v287 = vadd.f32 %v170, %v283
    %v288 = vmax.f32 %v286, 0.0
    %v289 = vmax.f32 %v287, 0.0
    %v290 = vld [vmem:[%s5] sm:$0x1]
    %v292 = vlaneseq
    %v293 = vshrl.u32 %v292, 7
    %v294 = vsub.s32 0, %v293
    %v295 = vrot.slane %v290, %v294
    %v297 = vmul.f32 %v288, %v295
    %v298 = vmul.f32 %v289, %v295
    %v299 = vsel %vm91, %v297, 0.0
    %300 = vadd.xlane.f32.xlu0 %v299
    %v301 = vpop.xlane.xlu0 %300
    %v302 = vsel %vm91, %v298, 0.0
    %303 = vadd.xlane.f32.xlu0 %v302
    %v304 = vpop.xlane.xlu0 %303
    %v307 = vlaneseq
    %v308 = vand.u32 %v307, 127
    %v309 = vlaneseq
    %v310 = vshrl.u32 %v309, 7
    %v311 = vsub.s32 %v308, %v310
    %v312 = vrot.slane %v301, %v311
    %v313 = vlaneseq
    %v314 = vshrl.u32 %v313, 7
    %v315 = vsub.s32 %v308, %v314
    %v316 = vrot.slane %v304, %v315
    %vm317 = vcmask 1041409
    %v318 = vsel %vm317, %v316, %v312
    %vm320 = vcmask 58368
    %v321 = vsel %vm320, %v318, -inf
    %322 = vmax.xlane.f32.xlu0 %v321
    %v323 = vpop.xlane.xlu0 %322
    %v325 = vlaneseq
    %v326 = vshrl.u32 %v325, 7
    %v327 = vsub.s32 0, %v326
    %v328 = vrot.slane %v323, %v327
    %v329 = vlaneseq
    %v330 = vshrl.u32 %v329, 7
    %v331 = vsub.s32 1, %v330
    %v332 = vrot.slane %v323, %v331
    %v335 = vsub.f32 %v301, %v328
    %v336 = vsub.f32 %v304, %v332
    %v337 = vmul.f32 %v335, 1.442695
    %v338 = vpow.pop %v337
    %v339 = vmul.f32 %v336, 1.442695
    %v340 = vpow.pop %v339
    %343 = vset.pattern.permute.xlu0 0
    %344 = vperm.xlu0 %343, %v338
    %v345 = vpop.permute.xlu0 %344
    %346 = vset.pattern.permute.xlu0 0
    %347 = vperm.xlu0 %346, %v340
    %v348 = vpop.permute.xlu0 %347
    %v349 = vlaneseq
    %v350 = vshrl.u32 %v349, 7
    %v351 = vsub.s32 %v308, %v350
    %v352 = vrot.slane %v345, %v351
    %v353 = vlaneseq
    %v354 = vshrl.u32 %v353, 7
    %v355 = vsub.s32 %v308, %v354
    %v356 = vrot.slane %v348, %v355
    %v357 = vsel %vm317, %v356, %v352
    %v359 = vsel %vm320, %v357, 0.0
    %360 = vadd.xlane.f32.xlu0 %v359
    %v361 = vpop.xlane.xlu0 %360
    %v362 = vrcp.pop %v361
    %v363 = vmul.f32 %v361, %v362
    %v364 = vsub.f32 2.0, %v363
    %v365 = vmul.f32 %v362, %v364
    %v367 = vlaneseq
    %v368 = vshrl.u32 %v367, 7
    %v369 = vsub.s32 0, %v368
    %v370 = vrot.slane %v365, %v369
    %v371 = vlaneseq
    %v372 = vshrl.u32 %v371, 7
    %v373 = vsub.s32 1, %v372
    %v374 = vrot.slane %v365, %v373
    %v377 = vmul.f32 %v338, %v370
    %v378 = vmul.f32 %v340, %v374
    %380 = vset.pattern.permute.xlu0 0
    %381 = vperm.xlu0 %380, %v377
    %v382 = vpop.permute.xlu0 %381
    %385 = vset.pattern.permute.xlu0 0
    %386 = vperm.xlu0 %385, %v378
    %v387 = vpop.permute.xlu0 %386
    %v389 = vmul.f32 %v382, %v81
    %v390 = vmul.f32 %v387, %v82
    %v391 = vsel %vm91, %v389, 0.0
    %v392 = vrot.slane %v391, 4
    %v393 = vadd.f32 %v391, %v392
    %v394 = vrot.slane %v393, 2
    %v395 = vadd.f32 %v393, %v394
    %v396 = vrot.slane %v395, 1
    %v397 = vadd.f32 %v395, %v396
    %v398 = vsel %vm91, %v390, 0.0
    %v399 = vrot.slane %v398, 4
    %v400 = vadd.f32 %v398, %v399
    %v401 = vrot.slane %v400, 2
    %v402 = vadd.f32 %v400, %v401
    %v403 = vrot.slane %v402, 1
    %v404 = vadd.f32 %v402, %v403
    %v407 = vsel %vm317, %v404, %v397
    %v409 = vsel %vm91, %v407, 0.0
    %v410 = vlaneseq
    %v411 = vshrl.u32 %v410, 7
    %v412 = vsub.s32 %v308, %v411
    %v413 = vrot.slane %v382, %v412
    %v414 = vlaneseq
    %v415 = vshrl.u32 %v414, 7
    %v416 = vsub.s32 %v308, %v415
    %v417 = vrot.slane %v387, %v416
    %v418 = vsel %vm317, %v417, %v413
    %vm420 = vcmask 64512
    %v421 = vsel %vm420, %v418, 0.0
    %422 = vst [vmem:[#allocation10] sm:$0x3] %v409
    %423 = vst [vmem:[#allocation11] sm:$0x3] %v421
    // Predicated region
    $region42: #{tpu_custom_call.1} parent=1 // pred_check
      _
    $region43: #{tpu_custom_call.1} parent=1 // pred_check_branch
      %425 = sbr.rel (0) target = $region45
    $region44: #{tpu_custom_call.1} parent=1 // pred_region
      %s427 = ssub.s32 32, 32
      %428 = vsyncadd [#allocation4], %s427
      %s430 = sshll.u32 [#allocation10], 4
      %s431 = int_to_ptr.vmem [resolvable:$true] %s430
      %433 = dma.vmem_to_hbm [thread:$0]  %s431, 32, %s6, [#allocation4]
    $region45: #{tpu_custom_call.1} parent=1 // pred_fallthru
      _
    // Predicated region
    $region46: #{tpu_custom_call.1} parent=1 // pred_check
      _
    $region47: #{tpu_custom_call.1} parent=1 // pred_check_branch
      %435 = sbr.rel (0) target = $region49
    $region48: #{tpu_custom_call.1} parent=1 // pred_region
      %s437 = ssub.s32 32, 32
      %438 = vsyncadd [#allocation12], %s437
      %s440 = sshll.u32 [#allocation11], 4
      %s441 = int_to_ptr.vmem [resolvable:$true] %s440
      %443 = dma.vmem_to_hbm [thread:$0]  %s441, 32, %s7, [#allocation12]
    $region49: #{tpu_custom_call.1} parent=1 // pred_fallthru
      _
    // Predicated region
    $region50: #{tpu_custom_call.1} parent=1 // pred_check
      _
    $region51: #{tpu_custom_call.1} parent=1 // pred_check_branch
      %445 = sbr.rel (0) target = $region53
    $region52: #{tpu_custom_call.1} parent=1 // pred_region
      %446 = dma.done [#allocation4], 32
    $region53: #{tpu_custom_call.1} parent=1 // pred_fallthru
      _
    // Predicated region
    $region54: #{tpu_custom_call.1} parent=1 // pred_check
      _
    $region55: #{tpu_custom_call.1} parent=1 // pred_check_branch
      %448 = sbr.rel (0) target = $region57
    $region56: #{tpu_custom_call.1} parent=1 // pred_region
      %449 = dma.done [#allocation12], 32
    $region57: #{tpu_custom_call.1} parent=1 // pred_fallthru
      _
    %450 = vsyncpa [#allocation3], 1
    %451 = vsyncpa [#allocation6], 1
    %452 = vsyncpa [#allocation9], 1
    %453 = vsyncpa [#allocation4], 1
    %454 = vsyncpa [#allocation12], 1

</llo_original>
